<compile_context>
chip_gen: v7x
topology: tpu7x:2x2x1
jax: 0.10.0
libtpu: 0.0.40
codegen_flags: <defaults>
</compile_context>

<pallas_src>
import jax
import jax.numpy as jnp
from jax import lax
from jax.experimental import pallas as pl
from jax.experimental.pallas import tpu as pltpu


# ----------------------------------------------------------------------------
# Kernel 1: node-embedding preprocessing (row-tiled over N, "parallel" grid).
#   S      = softmax(relu(E @ E^T), axis=1)   -> [N, N]   (matmul dtype)
#   bias_g = E @ bias_pool_gate               -> [N, 2H]  (f32)
#   bias_u = E @ bias_pool_update             -> [N, H]   (f32)
# ----------------------------------------------------------------------------
def _prep_kernel(e_row_ref, e_full_ref, bpg_ref, bpu_ref,
                 s_ref, bg_ref, bu_ref):
    e_row = e_row_ref[...]                                  # [Nt, D]
    e_full = e_full_ref[...]                                # [N, D]
    # relu(E_rows @ E^T): contract last dims (no explicit transpose).
    logits = lax.dot_general(e_row, e_full, (((1,), (1,)), ((), ())),
                             preferred_element_type=jnp.float32)
    logits = jnp.maximum(logits, 0.0)
    m = jnp.max(logits, axis=1, keepdims=True)
    p = jnp.exp(logits - m)
    inv = pl.reciprocal(jnp.sum(p, axis=1, keepdims=True), approx=False)
    s_ref[...] = (p * inv).astype(s_ref.dtype)
    bg_ref[...] = jnp.dot(e_row, bpg_ref[...], preferred_element_type=jnp.float32)
    bu_ref[...] = jnp.dot(e_row, bpu_ref[...], preferred_element_type=jnp.float32)


# ----------------------------------------------------------------------------
# Kernel 2: fused AGCRN cell (gate gconv -> sigmoid -> candidate gconv -> tanh
# -> GRU mix), `bt` batches per grid step, one lane-dense output slab.
# ----------------------------------------------------------------------------
def _make_cell_kernel(bt, cheb_k, dim_in, hidden, embed_dim, matmul_dtype):
    two_h = 2 * hidden

    def _dot(a, b):
        # astype is a no-op when the operand is already pre-cast in the wrapper.
        return jnp.dot(a.astype(matmul_dtype), b.astype(matmul_dtype),
                       preferred_element_type=jnp.float32)

    def kernel(s_ref, mask_ref, x_ref, h_ref, e_ref,
               wgx_ref, wgs_ref, wux_ref, wus_ref,
               bg_ref, bu_ref, o_ref):
        S = s_ref[...]                                      # [N, N] shared supports
        E = e_ref[...]                                      # [N, D] (f32, fold only)
        bg = bg_ref[...]                                    # [N, 2H]
        bu = bu_ref[...]                                    # [N, H]
        n_nodes = S.shape[0]

        # Hoisted once per grid step (JAX does not CSE broadcast_in_dim):
        # D broadcast embedding columns; the update fold reuses aligned slices.
        e_b2 = [jnp.broadcast_to(E[:, d:d + 1], (n_nodes, two_h))
                for d in range(embed_dim)]
        e_b1 = [eb[:, :hidden] for eb in e_b2]

        def cheb(A, v):
            # T_k(A) @ v carried on v; T_0 @ v == v (matches the reference's
            # unmasked identity term), never materializing N x N T_k matrices.
            terms = [v]
            if cheb_k > 1:
                terms.append(_dot(A, v))
            for _ in range(2, cheb_k):
                terms.append(2.0 * _dot(A, terms[-1]) - terms[-2])
            return terms

        def fold(zp, e_cols, bias, dim_out):
            out = bias
            for d in range(embed_dim):
                out = out + e_cols[d] * zp[:, d * dim_out:(d + 1) * dim_out]
            return out

        outs = []
        for bi in range(bt):                                # batches in this block
            A = S * mask_ref[bi]                            # masked supports [N, N]
            x = x_ref[bi]                                   # [N, dim_in]
            st = h_ref[bi]                                  # [N, H]

            tx = cheb(A, x)                                 # shared by both gconvs

            # --- gate gconv: zr = sigmoid(fold(sum_k tx_k@Wgx_k + ts_k@Wgs_k) + bg)
            ts = cheb(A, st)
            zp = _dot(tx[0], wgx_ref[0]) + _dot(ts[0], wgs_ref[0])
            for k in range(1, cheb_k):
                zp = zp + _dot(tx[k], wgx_ref[k]) + _dot(ts[k], wgs_ref[k])
            g = fold(zp, e_b2, bg, two_h)                   # [N, 2H]
            zr = 1.0 / (1.0 + jnp.exp(-g))                  # sigmoid (exact)
            z = zr[:, :hidden]
            r = zr[:, hidden:]

            # --- candidate gconv on [x | z*state]; x-side Chebyshev reused.
            tc = cheb(A, z * st)
            up = _dot(tx[0], wux_ref[0]) + _dot(tc[0], wus_ref[0])
            for k in range(1, cheb_k):
                up = up + _dot(tx[k], wux_ref[k]) + _dot(tc[k], wus_ref[k])
            hc = jnp.tanh(fold(up, e_b1, bu, hidden))       # [N, H]

            outs.append(r * st + (1.0 - r) * hc)

        # Single lane-dense store per grid step: [N, bt*H] slab instead of bt
        # masked [N, H] stores.
        o_ref[0] = outs[0] if bt == 1 else jnp.concatenate(outs, axis=1)

    return kernel


# ----------------------------------------------------------------------------
# Tiling heuristics
# ----------------------------------------------------------------------------
def _pick_row_tile(N):
    """Largest multiple-of-8 divisor of N (<=128), preferring >= 2 grid steps."""
    cands = [d for d in range(8, min(128, N) + 1, 8) if N % d == 0]
    multi = [d for d in cands if d <= N // 2]
    if multi:
        return max(multi)
    if cands:
        return max(cands)
    return N


def _pick_batch_tile(B, per_batch_bytes, resident_bytes,
                     budget_bytes=48 * 1024 * 1024, max_bt=4):
    """VMEM-aware batch tile; keeps >= 2 grid steps whenever B > 1."""
    best = 1
    for cand in range(1, min(B, max_bt) + 1):
        if B % cand != 0:
            continue
        if cand > 1 and cand == B:          # never a 1-step grid when B > 1
            continue
        if resident_bytes + 2 * cand * per_batch_bytes <= budget_bytes:
            best = cand
    return best


def _const_spec(shape):
    """BlockSpec for a grid-invariant operand; single-buffered when supported."""
    idx = lambda b: (0,) * len(shape)
    if hasattr(pl, "Buffered"):
        try:
            return pl.BlockSpec(shape, idx, pipeline_mode=pl.Buffered(1))
        except TypeError:
            pass
    return pl.BlockSpec(shape, idx)


# ----------------------------------------------------------------------------
# Wrapper
# ----------------------------------------------------------------------------
def agcrn_cell_forward(x, state, node_embeddings, adj_mask,
                       weights_pool_gate, bias_pool_gate,
                       weights_pool_update, bias_pool_update,
                       matmul_dtype=jnp.float32):
    """AGCRNCell.forward: returns the new hidden state h of shape [B, N, hidden].

    matmul_dtype: set to jnp.bfloat16 for ~2-3x MXU throughput and halved
    mask/weight HBM traffic (accumulation stays f32); keep f32 for the
    bit-tight 1e-4 check against the f32 reference.
    """
    f32 = jnp.float32
    B, N, dim_in = x.shape
    hidden = state.shape[-1]
    two_h = 2 * hidden
    D = node_embeddings.shape[1]
    K = weights_pool_gate.shape[1]
    mm_size = jnp.dtype(matmul_dtype).itemsize

    # Split + reorder weight pools (wrapper-side, once):
    #   w_x[k, i, d*O + o] = wp[d, k, i, o]            (x rows,     i < dim_in)
    #   w_s[k, j, d*O + o] = wp[d, k, dim_in + j, o]   (state rows)
    def _split(wp, dim_out):
        wx = jnp.transpose(wp[:, :, :dim_in, :], (1, 2, 0, 3)).reshape(
            K, dim_in, D * dim_out)
        ws = jnp.transpose(wp[:, :, dim_in:, :], (1, 2, 0, 3)).reshape(
            K, hidden, D * dim_out)
        return wx.astype(matmul_dtype), ws.astype(matmul_dtype)

    wgx, wgs = _split(weights_pool_gate, two_h)
    wux, wus = _split(weights_pool_update, hidden)

    # ---- prep: shared supports + per-node biases (row-tiled, megacore) ----
    nt = _pick_row_tile(N)
    prep_bytes = 4 * 2 * (nt * D + N * D + D * 3 * hidden
                          + nt * N + nt * 3 * hidden) + (8 << 20)
    prep_vmem = int(min(max(prep_bytes, 32 << 20), 64 << 20))
    s, bias_g, bias_u = pl.pallas_call(
        _prep_kernel,
        out_shape=(jax.ShapeDtypeStruct((N, N), matmul_dtype),
                   jax.ShapeDtypeStruct((N, two_h), f32),
                   jax.ShapeDtypeStruct((N, hidden), f32)),
        grid=(N // nt,),
        in_specs=[pl.BlockSpec((nt, D), lambda i: (i, 0)),
                  pl.BlockSpec((N, D), lambda i: (0, 0)),
                  pl.BlockSpec((D, two_h), lambda i: (0, 0)),
                  pl.BlockSpec((D, hidden), lambda i: (0, 0))],
        out_specs=(pl.BlockSpec((nt, N), lambda i: (i, 0)),
                   pl.BlockSpec((nt, two_h), lambda i: (i, 0)),
                   pl.BlockSpec((nt, hidden), lambda i: (i, 0))),
        compiler_params=pltpu.CompilerParams(
            dimension_semantics=("parallel",),
            vmem_limit_bytes=prep_vmem),
    )(node_embeddings, node_embeddings, bias_pool_gate, bias_pool_update)

    # ---- fused cell: `bt` batches per grid step, one lane-dense out slab ----
    resident = (N * N * mm_size                              # S (single-buffered)
                + N * D * 4                                  # E
                + K * (dim_in + hidden) * D * 3 * hidden * mm_size  # weight pools
                + N * two_h * 4 + N * hidden * 4)            # biases
    per_batch = (N * N * mm_size                             # mask block
                 + N * dim_in * 4 + N * hidden * 4           # x, state
                 + N * hidden * 4)                           # output slab share
    bt = _pick_batch_tile(B, per_batch, resident)
    cell_vmem = int(min(max(resident + 2 * bt * per_batch + (8 << 20), 32 << 20),
                        64 << 20))

    out = pl.pallas_call(
        _make_cell_kernel(bt, K, dim_in, hidden, D, matmul_dtype),
        out_shape=jax.ShapeDtypeStruct((B // bt, N, bt * hidden), f32),
        grid=(B // bt,),
        in_specs=[
            _const_spec((N, N)),                               # S
            pl.BlockSpec((bt, N, N), lambda b: (b, 0, 0)),     # adj mask
            pl.BlockSpec((bt, N, dim_in), lambda b: (b, 0, 0)),
            pl.BlockSpec((bt, N, hidden), lambda b: (b, 0, 0)),
            _const_spec((N, D)),                               # E
            _const_spec((K, dim_in, D * two_h)),               # gate W (x rows)
            _const_spec((K, hidden, D * two_h)),               # gate W (state rows)
            _const_spec((K, dim_in, D * hidden)),              # update W (x rows)
            _const_spec((K, hidden, D * hidden)),              # update W (state rows)
            _const_spec((N, two_h)),                           # gate bias
            _const_spec((N, hidden)),                          # update bias
        ],
        out_specs=pl.BlockSpec((1, N, bt * hidden), lambda b: (b, 0, 0)),
        compiler_params=pltpu.CompilerParams(
            dimension_semantics=("parallel",),
            vmem_limit_bytes=cell_vmem),
    )(s, adj_mask.astype(matmul_dtype), x, state, node_embeddings,
      wgx, wgs, wux, wus, bias_g, bias_u)

    # Un-interleave the lane-dense [B//bt, N, bt*H] slab back to [B, N, H].
    h = out.reshape(B // bt, N, bt, hidden).transpose(0, 2, 1, 3).reshape(
        B, N, hidden)
    return h


# ----------------------------------------------------------------------------
# Pure-JAX reference (mirrors the PyTorch AVWGCN / AGCRNCell line-by-line)
# ----------------------------------------------------------------------------
def _avwgcn_ref(x, E, adj_mask, wp, bp):
    N = E.shape[0]
    cheb_k = wp.shape[1]
    supports = jax.nn.softmax(jax.nn.relu(E @ E.T), axis=1)
    supports = jnp.broadcast_to(supports[None], adj_mask.shape) * adj_mask
    ident = jnp.broadcast_to(jnp.eye(N, dtype=x.dtype), adj_mask.shape)
    support_set = [ident, supports]
    for _ in range(2, cheb_k):
        support_set.append(jnp.matmul(2 * supports, support_set[-1]) - support_set[-2])
    supports_k = jnp.stack(support_set, axis=0)             # [K, B, N, N]
    weights = jnp.einsum('nd,dkio->nkio', E, wp)            # [N, K, Cin, Cout]
    bias = E @ bp                                           # [N, Cout]
    x_g = jnp.einsum('kbnm,bmc->bknc', supports_k, x)       # [B, K, N, Cin]
    x_g = jnp.transpose(x_g, (0, 2, 1, 3))                  # [B, N, K, Cin]
    return jnp.einsum('bnki,nkio->bno', x_g, weights) + bias


def _agcrn_cell_ref(x, state, E, adj_mask, wpg, bpg, wpu, bpu):
    hidden = state.shape[-1]
    inp = jnp.concatenate([x, state], axis=-1)
    zr = jax.nn.sigmoid(_avwgcn_ref(inp, E, adj_mask, wpg, bpg))
    z, r = zr[..., :hidden], zr[..., hidden:]
    cand = jnp.concatenate([x, z * state], axis=-1)
    hc = jnp.tanh(_avwgcn_ref(cand, E, adj_mask, wpu, bpu))
    return r * state + (1.0 - r) * hc


if __name__ == "__main__":
    B, N, dim_in, hidden, cheb_k, embed_dim = 2, 16, 4, 8, 3, 8
    cg = dim_in + hidden

    key = jax.random.PRNGKey(0)
    k1, k2, k3, k4, k5, k6, k7, k8 = jax.random.split(key, 8)
    x = jax.random.normal(k1, (B, N, dim_in), jnp.float32)
    state = jax.random.normal(k2, (B, N, hidden), jnp.float32)
    node_embeddings = jax.random.normal(k3, (N, embed_dim), jnp.float32)
    adj_mask = (jax.random.uniform(k4, (B, N, N)) > 0.3).astype(jnp.float32)
    # Deterministic synthetic parameters (the PyTorch module leaves them
    # uninitialized; AGCRN normally xavier-inits them outside the module).
    weights_pool_gate = 0.1 * jax.random.normal(
        k5, (embed_dim, cheb_k, cg, 2 * hidden), jnp.float32)
    bias_pool_gate = 0.1 * jax.random.normal(k6, (embed_dim, 2 * hidden), jnp.float32)
    weights_pool_update = 0.1 * jax.random.normal(
        k7, (embed_dim, cheb_k, cg, hidden), jnp.float32)
    bias_pool_update = 0.1 * jax.random.normal(k8, (embed_dim, hidden), jnp.float32)

    h = agcrn_cell_forward(x, state, node_embeddings, adj_mask,
                           weights_pool_gate, bias_pool_gate,
                           weights_pool_update, bias_pool_update)
    h = jax.block_until_ready(h)

    ref = _agcrn_cell_ref(x, state, node_embeddings, adj_mask,
                          weights_pool_gate, bias_pool_gate,
                          weights_pool_update, bias_pool_update)
    assert h.shape == (B, N, hidden)
    assert jnp.allclose(h, ref, atol=1e-4, rtol=1e-4), "mismatch vs JAX reference"
    print("KERNEL_OK")
</pallas_src>

<mosaic_0001>
module attributes {stable_mosaic.version = 11 : i64} {
  func.func @_prep_kernel(%arg0: i32, %arg1: memref<8x8xf32, #tpu.memory_space<vmem>>, %arg2: memref<16x8xf32, #tpu.memory_space<vmem>>, %arg3: memref<8x16xf32, #tpu.memory_space<vmem>>, %arg4: memref<8x8xf32, #tpu.memory_space<vmem>>, %arg5: memref<8x16xf32, #tpu.memory_space<vmem>>, %arg6: memref<8x16xf32, #tpu.memory_space<vmem>>, %arg7: memref<8x8xf32, #tpu.memory_space<vmem>>) attributes {dimension_semantics = [#tpu.dimension_semantics<parallel>], iteration_bounds = array<i64: 2>, scalar_prefetch = 0 : i64, scratch_operands = 0 : i64, tpu.core_type = #tpu.core_type<tc>, window_params = [{transform_indices = @transform_0, window_bounds = array<i64: 8, 8>}, {pipeline_mode = #tpu.pipeline_mode<synchronous>, transform_indices = @transform_1, window_bounds = array<i64: 16, 8>}, {pipeline_mode = #tpu.pipeline_mode<synchronous>, transform_indices = @transform_2, window_bounds = array<i64: 8, 16>}, {pipeline_mode = #tpu.pipeline_mode<synchronous>, transform_indices = @transform_3, window_bounds = array<i64: 8, 8>}, {transform_indices = @transform_4, window_bounds = array<i64: 8, 16>}, {transform_indices = @transform_5, window_bounds = array<i64: 8, 16>}, {transform_indices = @transform_6, window_bounds = array<i64: 8, 8>}]} {
    %c0 = arith.constant 0 : index
    %c0_0 = arith.constant 0 : index
    %0 = vector.load %arg1[%c0, %c0_0] : memref<8x8xf32, #tpu.memory_space<vmem>>, vector<8x8xf32>
    %c0_1 = arith.constant 0 : index
    %c0_2 = arith.constant 0 : index
    %1 = vector.load %arg2[%c0_1, %c0_2] : memref<16x8xf32, #tpu.memory_space<vmem>>, vector<16x8xf32>
    %cst = arith.constant dense<0.000000e+00> : vector<8x16xf32>
    %2 = tpu.matmul %0, %1, %cst {dimension_numbers = #tpu.dot_dimension_numbers<[1], [1], [0], [0], [0, 0, 1, 0], [], []>} : vector<8x8xf32>, vector<16x8xf32>, vector<8x16xf32> -> vector<8x16xf32>
    %cst_3 = arith.constant 0.000000e+00 : f32
    %3 = vector.broadcast %cst_3 : f32 to vector<8x16xf32>
    %4 = arith.maximumf %2, %3 : vector<8x16xf32>
    %cst_4 = arith.constant dense<0xFF800000> : vector<8xf32>
    %5 = vector.multi_reduction <maximumf>, %4, %cst_4 [1] : vector<8x16xf32> to vector<8xf32>
    %6 = vector.shape_cast %5 : vector<8xf32> to vector<8x1xf32>
    %7 = vector.broadcast %6 : vector<8x1xf32> to vector<8x16xf32>
    %8 = arith.subf %4, %7 : vector<8x16xf32>
    %9 = math.exp %8 : vector<8x16xf32>
    %cst_5 = arith.constant dense<0.000000e+00> : vector<8xf32>
    %10 = vector.multi_reduction <add>, %9, %cst_5 [1] : vector<8x16xf32> to vector<8xf32>
    %11 = vector.shape_cast %10 : vector<8xf32> to vector<8x1xf32>
    %12 = tpu.reciprocal %11 : vector<8x1xf32> -> vector<8x1xf32>
    %13 = vector.broadcast %12 : vector<8x1xf32> to vector<8x16xf32>
    %14 = arith.mulf %9, %13 : vector<8x16xf32>
    %c0_6 = arith.constant 0 : index
    %c0_7 = arith.constant 0 : index
    %15 = vector.load %arg5[%c0_6, %c0_7] : memref<8x16xf32, #tpu.memory_space<vmem>>, vector<8x16xf32>
    tpu.vector_store %arg5[%c0_6, %c0_7], %14 {strides = array<i32>} : memref<8x16xf32, #tpu.memory_space<vmem>>, vector<8x16xf32>,
    %c0_8 = arith.constant 0 : index
    %c0_9 = arith.constant 0 : index
    %16 = vector.load %arg3[%c0_8, %c0_9] : memref<8x16xf32, #tpu.memory_space<vmem>>, vector<8x16xf32>
    %cst_10 = arith.constant dense<0.000000e+00> : vector<8x16xf32>
    %17 = tpu.matmul %0, %16, %cst_10 {dimension_numbers = #tpu.dot_dimension_numbers<[1], [0], [0], [1], [0, 0, 1, 1], [], []>} : vector<8x8xf32>, vector<8x16xf32>, vector<8x16xf32> -> vector<8x16xf32>
    %c0_11 = arith.constant 0 : index
    %c0_12 = arith.constant 0 : index
    %18 = vector.load %arg6[%c0_11, %c0_12] : memref<8x16xf32, #tpu.memory_space<vmem>>, vector<8x16xf32>
    tpu.vector_store %arg6[%c0_11, %c0_12], %17 {strides = array<i32>} : memref<8x16xf32, #tpu.memory_space<vmem>>, vector<8x16xf32>,
    %c0_13 = arith.constant 0 : index
    %c0_14 = arith.constant 0 : index
    %19 = vector.load %arg4[%c0_13, %c0_14] : memref<8x8xf32, #tpu.memory_space<vmem>>, vector<8x8xf32>
    %cst_15 = arith.constant dense<0.000000e+00> : vector<8x8xf32>
    %20 = tpu.matmul %0, %19, %cst_15 {dimension_numbers = #tpu.dot_dimension_numbers<[1], [0], [0], [1], [0, 0, 1, 1], [], []>} : vector<8x8xf32>, vector<8x8xf32>, vector<8x8xf32> -> vector<8x8xf32>
    %c0_16 = arith.constant 0 : index
    %c0_17 = arith.constant 0 : index
    %21 = vector.load %arg7[%c0_16, %c0_17] : memref<8x8xf32, #tpu.memory_space<vmem>>, vector<8x8xf32>
    tpu.vector_store %arg7[%c0_16, %c0_17], %20 {strides = array<i32>} : memref<8x8xf32, #tpu.memory_space<vmem>>, vector<8x8xf32>,
    return
  }
  func.func @transform_0(%arg0: i32) -> (i32, i32) {
    %c0_i32 = arith.constant 0 : i32
    %c0_i32_0 = arith.constant 0 : i32
    return %arg0, %c0_i32 : i32, i32
  }
  func.func @transform_1(%arg0: i32) -> (i32, i32) {
    %c0_i32 = arith.constant 0 : i32
    %c0_i32_0 = arith.constant 0 : i32
    %c0_i32_1 = arith.constant 0 : i32
    return %c0_i32, %c0_i32_0 : i32, i32
  }
  func.func @transform_2(%arg0: i32) -> (i32, i32) {
    %c0_i32 = arith.constant 0 : i32
    %c0_i32_0 = arith.constant 0 : i32
    %c0_i32_1 = arith.constant 0 : i32
    return %c0_i32, %c0_i32_0 : i32, i32
  }
  func.func @transform_3(%arg0: i32) -> (i32, i32) {
    %c0_i32 = arith.constant 0 : i32
    %c0_i32_0 = arith.constant 0 : i32
    %c0_i32_1 = arith.constant 0 : i32
    return %c0_i32, %c0_i32_0 : i32, i32
  }
  func.func @transform_4(%arg0: i32) -> (i32, i32) {
    %c0_i32 = arith.constant 0 : i32
    %c0_i32_0 = arith.constant 0 : i32
    return %arg0, %c0_i32 : i32, i32
  }
  func.func @transform_5(%arg0: i32) -> (i32, i32) {
    %c0_i32 = arith.constant 0 : i32
    %c0_i32_0 = arith.constant 0 : i32
    return %arg0, %c0_i32 : i32, i32
  }
  func.func @transform_6(%arg0: i32) -> (i32, i32) {
    %c0_i32 = arith.constant 0 : i32
    %c0_i32_0 = arith.constant 0 : i32
    return %arg0, %c0_i32 : i32, i32
  }
}

</mosaic_0001>

<llo_original>
// kernel: tpu_custom_call.1
$region0: #{tpu_custom_call.1}
  #allocation0 [shape = 'u32[]', space=smem, size = 0x4, offset = 0x4, fixed_abs, tag = 'smem constant byte address 0x4 - core index']
  #allocation1 [shape = 'u32[144,128]{1,0:T(1,128)}', space=vmem, size = 0x12000, scoped, tag = 'internal scratch']
  %s0 = inlined_call_operand.vmem [shape: f32[16,8], index: 0, kind: input, shape index: {}]
  %s1 = inlined_call_operand.vmem [shape: f32[16,8], index: 1, kind: input, shape index: {}]
  %s2 = inlined_call_operand.vmem [shape: f32[8,16], index: 2, kind: input, shape index: {}]
  %s3 = inlined_call_operand.vmem [shape: f32[8,8], index: 3, kind: input, shape index: {}]
  %s4 = inlined_call_operand.hbm [shape: f32[16,16], index: 4, kind: output, shape index: {0}]
  %s5 = inlined_call_operand.hbm [shape: f32[16,16], index: 5, kind: output, shape index: {1}]
  %s6 = inlined_call_operand.vmem [shape: f32[16,8], index: 6, kind: output, shape index: {2}]
  %7 = xla_tuple %s4, %s5, %s6
  %s8 = sld [smem:[#allocation0]]
  $region65: #{tpu_custom_call.1} parent=0
    _
  %s10 = ssub.s32 1, %s8
  %s11 = scalar_select 0, %s10, %s8
  $region1: #{tpu_custom_call.1} parent=0
    #allocation2 [shape = 'u8[8192]{0}', space=vmem, size = 0x2000, scoped, tag = 'output window, operand 0']
    #allocation3 [shape = 's32[2]{0}', space=sflag, size = 0x8, scoped, tag = 'scoped memory for tpu_custom_call.1']
    #allocation4 [shape = 'u8[8192]{0}', space=vmem, size = 0x2000, scoped, tag = 'output window, operand 1']
    #allocation5 [shape = 's32[2]{0}', space=sflag, size = 0x8, scoped, tag = 'scoped memory for tpu_custom_call.1']
    %12 = vsyncpa [#allocation3], 0
    %s13 = scalar_lea.sflag [#allocation3], 1
    %14 = vsyncpa %s13, 0
    %15 = vsyncpa [#allocation5], 0
    %s16 = scalar_lea.sflag [#allocation5], 1
    %17 = vsyncpa %s16, 0
    loop: start=0, step=1, limit=4
    $region2: #{tpu_custom_call.1} parent=1 // loop_pre_header
      _
    $region3: #{tpu_custom_call.1} parent=1 // loop_header
      %s19 = sphi 0, %s23
      %p20 = scmp.ge.s32.totalorder %s19, 4
      %s29 = sphi 0, %s31
      %s32 = sphi 0, %s29
      %s33 = sphi 0, %s32
      %s49 = sphi 0, %s33
      %s53 = sphi 0, %s53
      %s55 = sphi 0, %s53
      %s56 = sphi 0, %s55
      %s70 = sphi 0, %s56
      %s74 = sphi 0, %s74
      %s76 = sphi 0, %s74
      %s77 = sphi 0, %s76
      %s91 = sphi 0, %s77
      %s95 = sphi 0, %s95
      %s97 = sphi 0, %s95
      %s98 = sphi 0, %s97
      %s112 = sphi 0, %s98
      %s118 = sphi 0, %s120
      %s121 = sphi 0, %s118
      %s122 = sphi 0, %s121
      %s138 = sphi 0, %s122
      %s144 = sphi 0, %s146
      %s147 = sphi 0, %s144
      %s148 = sphi 0, %s147
      %s164 = sphi 0, %s148
      %s170 = sphi 0, %s172
      %s173 = sphi 0, %s170
      %s174 = sphi 0, %s173
      %s190 = sphi 0, %s174
    $region4: #{tpu_custom_call.1} parent=1 // loop_header_branch
      %22 = sbr.rel (%p20) target = $region8
    $region5: #{tpu_custom_call.1} parent=1 // loop_body
      %s24 = ssub.s32 %s19, 1
      %s25 = ssub.s32 %s19, 2
      %s26 = sadd.s32 %s19, 1
      %s27 = ssub.s32 %s19, %s26
      %p28 = scmp.eq.s32.totalorder %s27, 0
      %s30 = sadd.s32 %s29, 1
      %s31 = scalar_select %p28, %s29, %s30
      %p34 = pneg %p28
      %p35 = scmp.eq.s32.totalorder %s19, 1
      %p36 = por %p34, %p35
      %p37 = scmp.ne.s32.totalorder %s29, %s32
      %p38 = scmp.eq.s32.totalorder %s19, 0
      %p39 = por %p37, %p38
      %p40 = scmp.ne.s32.totalorder %s29, %s32
      %p41 = scmp.eq.s32.totalorder %s24, 1
      %p42 = por %p40, %p41
      %p43 = scmp.ne.s32.totalorder %s32, %s33
      %p44 = scmp.eq.s32.totalorder %s24, 0
      %p45 = por %p43, %p44
      %p46 = scmp.ne.s32.totalorder %s32, %s33
      %p47 = scmp.eq.s32.totalorder %s25, 1
      %p48 = por %p46, %p47
      %p50 = scmp.ne.s32.totalorder %s33, %s49
      %p51 = scmp.eq.s32.totalorder %s25, 0
      %p52 = por %p50, %p51
      %s54 = sadd.s32 %s53, 1
      %p57 = scmp.eq.s32.totalorder %s19, 1
      %p58 = scmp.ne.s32.totalorder %s53, %s55
      %p59 = scmp.eq.s32.totalorder %s19, 0
      %p60 = por %p58, %p59
      %p61 = scmp.ne.s32.totalorder %s53, %s55
      %p62 = scmp.eq.s32.totalorder %s24, 1
      %p63 = por %p61, %p62
      %p64 = scmp.ne.s32.totalorder %s55, %s56
      %p65 = scmp.eq.s32.totalorder %s24, 0
      %p66 = por %p64, %p65
      %p67 = scmp.ne.s32.totalorder %s55, %s56
      %p68 = scmp.eq.s32.totalorder %s25, 1
      %p69 = por %p67, %p68
      %p71 = scmp.ne.s32.totalorder %s56, %s70
      %p72 = scmp.eq.s32.totalorder %s25, 0
      %p73 = por %p71, %p72
      %s75 = sadd.s32 %s74, 1
      %p78 = scmp.eq.s32.totalorder %s19, 1
      %p79 = scmp.ne.s32.totalorder %s74, %s76
      %p80 = scmp.eq.s32.totalorder %s19, 0
      %p81 = por %p79, %p80
      %p82 = scmp.ne.s32.totalorder %s74, %s76
      %p83 = scmp.eq.s32.totalorder %s24, 1
      %p84 = por %p82, %p83
      %p85 = scmp.ne.s32.totalorder %s76, %s77
      %p86 = scmp.eq.s32.totalorder %s24, 0
      %p87 = por %p85, %p86
      %p88 = scmp.ne.s32.totalorder %s76, %s77
      %p89 = scmp.eq.s32.totalorder %s25, 1
      %p90 = por %p88, %p89
      %p92 = scmp.ne.s32.totalorder %s77, %s91
      %p93 = scmp.eq.s32.totalorder %s25, 0
      %p94 = por %p92, %p93
      %s96 = sadd.s32 %s95, 1
      %p99 = scmp.eq.s32.totalorder %s19, 1
      %p100 = scmp.ne.s32.totalorder %s95, %s97
      %p101 = scmp.eq.s32.totalorder %s19, 0
      %p102 = por %p100, %p101
      %p103 = scmp.ne.s32.totalorder %s95, %s97
      %p104 = scmp.eq.s32.totalorder %s24, 1
      %p105 = por %p103, %p104
      %p106 = scmp.ne.s32.totalorder %s97, %s98
      %p107 = scmp.eq.s32.totalorder %s24, 0
      %p108 = por %p106, %p107
      %p109 = scmp.ne.s32.totalorder %s97, %s98
      %p110 = scmp.eq.s32.totalorder %s25, 1
      %p111 = por %p109, %p110
      %p113 = scmp.ne.s32.totalorder %s98, %s112
      %p114 = scmp.eq.s32.totalorder %s25, 0
      %p115 = por %p113, %p114
      %s116 = ssub.s32 %s19, %s26
      %p117 = scmp.eq.s32.totalorder %s116, 0
      %s119 = sadd.s32 %s118, 1
      %s120 = scalar_select %p117, %s118, %s119
      %p123 = pneg %p117
      %p124 = scmp.eq.s32.totalorder %s19, 1
      %p125 = por %p123, %p124
      %p126 = scmp.ne.s32.totalorder %s118, %s121
      %p127 = scmp.eq.s32.totalorder %s19, 0
      %p128 = por %p126, %p127
      %p129 = scmp.ne.s32.totalorder %s118, %s121
      %p130 = scmp.eq.s32.totalorder %s24, 1
      %p131 = por %p129, %p130
      %p132 = scmp.ne.s32.totalorder %s121, %s122
      %p133 = scmp.eq.s32.totalorder %s24, 0
      %p134 = por %p132, %p133
      %p135 = scmp.ne.s32.totalorder %s121, %s122
      %p136 = scmp.eq.s32.totalorder %s25, 1
      %p137 = por %p135, %p136
      %p139 = scmp.ne.s32.totalorder %s122, %s138
      %p140 = scmp.eq.s32.totalorder %s25, 0
      %p141 = por %p139, %p140
      %s142 = ssub.s32 %s19, %s26
      %p143 = scmp.eq.s32.totalorder %s142, 0
      %s145 = sadd.s32 %s144, 1
      %s146 = scalar_select %p143, %s144, %s145
      %p149 = pneg %p143
      %p150 = scmp.eq.s32.totalorder %s19, 1
      %p151 = por %p149, %p150
      %p152 = scmp.ne.s32.totalorder %s144, %s147
      %p153 = scmp.eq.s32.totalorder %s19, 0
      %p154 = por %p152, %p153
      %p155 = scmp.ne.s32.totalorder %s144, %s147
      %p156 = scmp.eq.s32.totalorder %s24, 1
      %p157 = por %p155, %p156
      %p158 = scmp.ne.s32.totalorder %s147, %s148
      %p159 = scmp.eq.s32.totalorder %s24, 0
      %p160 = por %p158, %p159
      %p161 = scmp.ne.s32.totalorder %s147, %s148
      %p162 = scmp.eq.s32.totalorder %s25, 1
      %p163 = por %p161, %p162
      %p165 = scmp.ne.s32.totalorder %s148, %s164
      %p166 = scmp.eq.s32.totalorder %s25, 0
      %p167 = por %p165, %p166
      %s168 = ssub.s32 %s19, %s26
      %p169 = scmp.eq.s32.totalorder %s168, 0
      %s171 = sadd.s32 %s170, 1
      %s172 = scalar_select %p169, %s170, %s171
      %p175 = pneg %p169
      %p176 = scmp.eq.s32.totalorder %s19, 1
      %p177 = por %p175, %p176
      %p178 = scmp.ne.s32.totalorder %s170, %s173
      %p179 = scmp.eq.s32.totalorder %s19, 0
      %p180 = por %p178, %p179
      %p181 = scmp.ne.s32.totalorder %s170, %s173
      %p182 = scmp.eq.s32.totalorder %s24, 1
      %p183 = por %p181, %p182
      %p184 = scmp.ne.s32.totalorder %s173, %s174
      %p185 = scmp.eq.s32.totalorder %s24, 0
      %p186 = por %p184, %p185
      %p187 = scmp.ne.s32.totalorder %s173, %s174
      %p188 = scmp.eq.s32.totalorder %s25, 1
      %p189 = por %p187, %p188
      %p191 = scmp.ne.s32.totalorder %s174, %s190
      %p192 = scmp.eq.s32.totalorder %s25, 0
      %p193 = por %p191, %p192
      %p194 = scmp.le.s32.totalorder 1, %s19
      %p195 = scmp.lt.s32.totalorder %s19, 3
      %p196 = pnand %p194, %p195
      %p197 = pneg %p196
      // Predicated region
      $region9: #{tpu_custom_call.1} parent=5 // pred_check
        _
      $region10: #{tpu_custom_call.1} parent=5 // pred_check_branch
        %199 = sbr.rel (%p196) target = $region12
      $region11: #{tpu_custom_call.1} parent=5 // pred_region
        %s200 = ssub.s32 %s19, 1
        // Predicated region
        $region13: #{tpu_custom_call.1} parent=11 // pred_check
          %p201 = pneg %p66
        $region14: #{tpu_custom_call.1} parent=11 // pred_check_branch
          %203 = sbr.rel (%p201) target = $region16
        $region15: #{tpu_custom_call.1} parent=11 // pred_region
          _
        $region16: #{tpu_custom_call.1} parent=11 // pred_fallthru
          _
        // Predicated region
        $region17: #{tpu_custom_call.1} parent=11 // pred_check
          %p204 = pneg %p87
        $region18: #{tpu_custom_call.1} parent=11 // pred_check_branch
          %206 = sbr.rel (%p204) target = $region20
        $region19: #{tpu_custom_call.1} parent=11 // pred_region
          _
        $region20: #{tpu_custom_call.1} parent=11 // pred_fallthru
          _
        // Predicated region
        $region21: #{tpu_custom_call.1} parent=11 // pred_check
          %p207 = pneg %p108
        $region22: #{tpu_custom_call.1} parent=11 // pred_check_branch
          %209 = sbr.rel (%p207) target = $region24
        $region23: #{tpu_custom_call.1} parent=11 // pred_region
          _
        $region24: #{tpu_custom_call.1} parent=11 // pred_fallthru
          _
      $region12: #{tpu_custom_call.1} parent=5 // pred_fallthru
        _
      %p210 = scmp.lt.s32.totalorder %s19, 2
      // Predicated region
      $region25: #{tpu_custom_call.1} parent=5 // pred_check
        %p211 = pneg %p210
      $region26: #{tpu_custom_call.1} parent=5 // pred_check_branch
        %213 = sbr.rel (%p211) target = $region28
      $region27: #{tpu_custom_call.1} parent=5 // pred_region
        // Predicated region
        $region29: #{tpu_custom_call.1} parent=27 // pred_check
          %p214 = pneg %p39
        $region30: #{tpu_custom_call.1} parent=27 // pred_check_branch
          %216 = sbr.rel (%p214) target = $region32
        $region31: #{tpu_custom_call.1} parent=27 // pred_region
          %p217 = scmp.lt.s32.totalorder %s19, 1
          %s218 = scalar_select %p217, %s19, 1
          %s219 = smul.addr %s218, 8
          %s220 = scalar_lea.vmem %s0, %s219
        $region32: #{tpu_custom_call.1} parent=27 // pred_fallthru
          _
      $region28: #{tpu_custom_call.1} parent=5 // pred_fallthru
        _
      %p221 = scmp.le.s32.totalorder 1, %s19
      %p222 = scmp.lt.s32.totalorder %s19, 3
      %p223 = pnand %p221, %p222
      %p224 = pneg %p223
      // Predicated region
      $region33: #{tpu_custom_call.1} parent=5 // pred_check
        _
      $region34: #{tpu_custom_call.1} parent=5 // pred_check_branch
        %226 = sbr.rel (%p223) target = $region36
      $region35: #{tpu_custom_call.1} parent=5 // pred_region
        %s227 = ssub.s32 %s19, 1
        %p228 = scmp.lt.s32.totalorder %s24, 1
        %s229 = scalar_select %p228, %s24, 1
        %s230 = smul.addr %s229, 8
        %s231 = scalar_lea.vmem %s0, %s230
        %p232 = pneg %p45
        %p233 = pneg %p42
        %p234 = pneg %p66
        %p235 = pneg %p63
        %p236 = pneg %p87
        %p237 = pneg %p84
        %p238 = pneg %p108
        %p239 = pneg %p105
        %p240 = pneg %p134
        %p241 = pneg %p131
        %s242 = sand.u32 %s121, 1
        %s243 = scalar_lea.sflag [#allocation3], %s242
        %s244 = sand.u32 %s121, 1
        %s245 = smul.addr %s244, 8
        %s246 = scalar_lea.vmem [#allocation2], %s245
        %p247 = pneg %p160
        %p248 = pneg %p157
        %s249 = sand.u32 %s147, 1
        %s250 = scalar_lea.sflag [#allocation5], %s249
        %s251 = sand.u32 %s147, 1
        %s252 = smul.addr %s251, 8
        %s253 = scalar_lea.vmem [#allocation4], %s252
        %p254 = pneg %p186
        %p255 = pneg %p183
        %p256 = scmp.lt.s32.totalorder %s24, 1
        %s257 = scalar_select %p256, %s24, 1
        %s258 = smul.addr %s257, 8
        %s259 = scalar_lea.vmem %s6, %s258
        %p260 = scmp.lt.s32.totalorder %s24, 1
        %s261 = scalar_select %p260, %s24, 1
        %s262 = smul.addr %s261, 8
        %s263 = scalar_lea.vmem %s0, %s262
        %p264 = scmp.lt.s32.totalorder %s24, 1
        %s265 = scalar_select %p264, %s24, 1
        %s266 = smul.addr %s265, 8
        %s267 = scalar_lea.vmem %s6, %s266
        %v268 = vld [vmem:[%s263] sm:$0xff]
        %v269 = vld [vmem:[%s1] sm:$0xff]
        %v270 = vld [vmem:[%s1 + $0x8] sm:$0xff]
        %vm271 = vcmask 64512
        %v273 = vsel %vm271, %v268, 0
        %v276 = vsel %vm271, %v269, 0
        %v279 = vsel %vm271, %v270, 0
        %281 = vmatprep.subr.mxu0 0.0
        %282 = vmatpush1.xpose.msra.mxu0 %v276
        %283 = vmatprep.subr.mxu0 0.0
        %284 = vmatpush1.xpose.msra.mxu0 %v279
        %285 = vmatprep.subr.mxu0 0.0
        %286 = vmatpush1.xpose.msra.mxu0 0.0
        %287 = vmatprep.subr.mxu0 0.0
        %288 = vmatpush1.xpose.msra.mxu0 0.0
        %289 = vmatprep.subr.mxu0 0.0
        %290 = vmatpush1.xpose.msra.mxu0 0.0
        %291 = vmatprep.subr.mxu0 0.0
        %292 = vmatpush1.xpose.msra.mxu0 0.0
        %293 = vmatprep.subr.mxu0 0.0
        %294 = vmatpush1.xpose.msra.mxu0 0.0
        %295 = vmatprep.subr.mxu0 0.0
        %296 = vmatpush1.xpose.msra.mxu0 0.0
        %297 = vmatprep.subr.mxu0 0.0
        %298 = vmatpush1.xpose.msra.mxu0 0.0
        %299 = vmatprep.subr.mxu0 0.0
        %300 = vmatpush1.xpose.msra.mxu0 0.0
        %301 = vmatprep.subr.mxu0 0.0
        %302 = vmatpush1.xpose.msra.mxu0 0.0
        %303 = vmatprep.subr.mxu0 0.0
        %304 = vmatpush1.xpose.msra.mxu0 0.0
        %305 = vmatprep.subr.mxu0 0.0
        %306 = vmatpush1.xpose.msra.mxu0 0.0
        %307 = vmatprep.subr.mxu0 0.0
        %308 = vmatpush1.xpose.msra.mxu0 0.0
        %309 = vmatprep.subr.mxu0 0.0
        %310 = vmatpush1.xpose.msra.mxu0 0.0
        %311 = vmatprep.subr.mxu0 0.0
        %312 = vmatpush1.xpose.msra.mxu0 0.0
        %313 = vmatprep.subr.mxu0 0.0
        %314 = vmatpush1.xpose.msra.mxu0 0.0
        %315 = vmatprep.subr.mxu0 0.0
        %316 = vmatpush1.xpose.msra.mxu0 0.0
        %317 = vmatprep.subr.mxu0 0.0
        %318 = vmatpush1.xpose.msra.mxu0 0.0
        %319 = vmatprep.subr.mxu0 0.0
        %320 = vmatpush1.xpose.msra.mxu0 0.0
        %321 = vmatprep.subr.mxu0 0.0
        %322 = vmatpush1.xpose.msra.mxu0 0.0
        %323 = vmatprep.subr.mxu0 0.0
        %324 = vmatpush1.xpose.msra.mxu0 0.0
        %325 = vmatprep.subr.mxu0 0.0
        %326 = vmatpush1.xpose.msra.mxu0 0.0
        %327 = vmatprep.subr.mxu0 0.0
        %328 = vmatpush1.xpose.msra.mxu0 0.0
        %329 = vmatprep.subr.mxu0 0.0
        %330 = vmatpush1.xpose.msra.mxu0 0.0
        %331 = vmatprep.subr.mxu0 0.0
        %332 = vmatpush1.xpose.msra.mxu0 0.0
        %333 = vmatprep.subr.mxu0 0.0
        %334 = vmatpush1.xpose.msra.mxu0 0.0
        %335 = vmatprep.subr.mxu0 0.0
        %336 = vmatpush1.xpose.msra.mxu0 0.0
        %337 = vmatprep.subr.mxu0 0.0
        %338 = vmatpush1.xpose.msra.mxu0 0.0
        %339 = vmatprep.subr.mxu0 0.0
        %340 = vmatpush1.xpose.msra.mxu0 0.0
        %341 = vmatprep.subr.mxu0 0.0
        %342 = vmatpush1.xpose.msra.mxu0 0.0
        %343 = vmatprep.subr.mxu0 0.0
        %344 = vmatpush1.xpose.msra.mxu0 0.0
        %345 = vmatprep.mubr.f32.mxu0 0.0
        %346 = vmatmul.mubr.f32.gmra.mrb[0].mxu0 %v273
        %v347 = vpop.f32.mrb[0].mxu0
        %v348 = vadd.f32 0.0, %v347
        %v349 = vpop.f32.mrb[0].mxu0
        %350 = vdwg.mxu0
        %v351 = vmax.f32 %v348, 0.0
        %vm352 = vcmask 130048
        %v353 = vsel %vm352, %v351, -inf
        %354 = vmax.xlane.f32.xlu0 %v353
        %v355 = vpop.xlane.xlu0 %354
        %v356 = vsub.f32 %v351, %v355
        %v357 = vmul.f32 %v356, 1.442695
        %v358 = vpow.pop %v357
        %v359 = vsel %vm352, %v358, 0.0
        %360 = vadd.xlane.f32.xlu0 %v359
        %v361 = vpop.xlane.xlu0 %360
        %v362 = vrcp.pop %v361
        %v363 = vmul.f32 %v358, %v362
        %364 = vst.msk [vmem:[%s246] sm:$0xff] %vm352, %v363
        %v365 = vld [vmem:[%s2] sm:$0xff]
        %366 = vmatprep.subr.mxu0 0.0
        %367 = vmatpush1.msra.mxu0 %v365
        %368 = vmatprep.subr.mxu0 0.0
        %369 = vmatpush1.msra.mxu0 0.0
        %370 = vmatprep.subr.mxu0 0.0
        %371 = vmatpush1.msra.mxu0 0.0
        %372 = vmatprep.subr.mxu0 0.0
        %373 = vmatpush1.msra.mxu0 0.0
        %374 = vmatprep.subr.mxu0 0.0
        %375 = vmatpush1.msra.mxu0 0.0
        %376 = vmatprep.subr.mxu0 0.0
        %377 = vmatpush1.msra.mxu0 0.0
        %378 = vmatprep.subr.mxu0 0.0
        %379 = vmatpush1.msra.mxu0 0.0
        %380 = vmatprep.subr.mxu0 0.0
        %381 = vmatpush1.msra.mxu0 0.0
        %382 = vmatprep.subr.mxu0 0.0
        %383 = vmatpush1.msra.mxu0 0.0
        %384 = vmatprep.subr.mxu0 0.0
        %385 = vmatpush1.msra.mxu0 0.0
        %386 = vmatprep.subr.mxu0 0.0
        %387 = vmatpush1.msra.mxu0 0.0
        %388 = vmatprep.subr.mxu0 0.0
        %389 = vmatpush1.msra.mxu0 0.0
        %390 = vmatprep.subr.mxu0 0.0
        %391 = vmatpush1.msra.mxu0 0.0
        %392 = vmatprep.subr.mxu0 0.0
        %393 = vmatpush1.msra.mxu0 0.0
        %394 = vmatprep.subr.mxu0 0.0
        %395 = vmatpush1.msra.mxu0 0.0
        %396 = vmatprep.subr.mxu0 0.0
        %397 = vmatpush1.msra.mxu0 0.0
        %398 = vmatprep.subr.mxu0 0.0
        %399 = vmatpush1.msra.mxu0 0.0
        %400 = vmatprep.subr.mxu0 0.0
        %401 = vmatpush1.msra.mxu0 0.0
        %402 = vmatprep.subr.mxu0 0.0
        %403 = vmatpush1.msra.mxu0 0.0
        %404 = vmatprep.subr.mxu0 0.0
        %405 = vmatpush1.msra.mxu0 0.0
        %406 = vmatprep.subr.mxu0 0.0
        %407 = vmatpush1.msra.mxu0 0.0
        %408 = vmatprep.subr.mxu0 0.0
        %409 = vmatpush1.msra.mxu0 0.0
        %410 = vmatprep.subr.mxu0 0.0
        %411 = vmatpush1.msra.mxu0 0.0
        %412 = vmatprep.subr.mxu0 0.0
        %413 = vmatpush1.msra.mxu0 0.0
        %414 = vmatprep.subr.mxu0 0.0
        %415 = vmatpush1.msra.mxu0 0.0
        %416 = vmatprep.subr.mxu0 0.0
        %417 = vmatpush1.msra.mxu0 0.0
        %418 = vmatprep.subr.mxu0 0.0
        %419 = vmatpush1.msra.mxu0 0.0
        %420 = vmatprep.subr.mxu0 0.0
        %421 = vmatpush1.msra.mxu0 0.0
        %422 = vmatprep.subr.mxu0 0.0
        %423 = vmatpush1.msra.mxu0 0.0
        %424 = vmatprep.subr.mxu0 0.0
        %425 = vmatpush1.msra.mxu0 0.0
        %426 = vmatprep.subr.mxu0 0.0
        %427 = vmatpush1.msra.mxu0 0.0
        %428 = vmatprep.subr.mxu0 0.0
        %429 = vmatpush1.msra.mxu0 0.0
        %430 = vmatprep.mubr.f32.mxu0 0.0
        %431 = vmatmul.mubr.f32.gmra.mrb[0].mxu0 %v273
        %v432 = vpop.f32.mrb[0].mxu0
        %v433 = vadd.f32 0.0, %v432
        %v434 = vpop.f32.mrb[0].mxu0
        %435 = vdwg.mxu0
        %436 = vst.msk [vmem:[%s253] sm:$0xff] %vm352, %v433
        %v437 = vld [vmem:[%s3] sm:$0xff]
        %438 = vmatprep.subr.mxu0 0.0
        %439 = vmatpush1.msra.mxu0 %v437
        %440 = vmatprep.subr.mxu0 0.0
        %441 = vmatpush1.msra.mxu0 0.0
        %442 = vmatprep.subr.mxu0 0.0
        %443 = vmatpush1.msra.mxu0 0.0
        %444 = vmatprep.subr.mxu0 0.0
        %445 = vmatpush1.msra.mxu0 0.0
        %446 = vmatprep.subr.mxu0 0.0
        %447 = vmatpush1.msra.mxu0 0.0
        %448 = vmatprep.subr.mxu0 0.0
        %449 = vmatpush1.msra.mxu0 0.0
        %450 = vmatprep.subr.mxu0 0.0
        %451 = vmatpush1.msra.mxu0 0.0
        %452 = vmatprep.subr.mxu0 0.0
        %453 = vmatpush1.msra.mxu0 0.0
        %454 = vmatprep.subr.mxu0 0.0
        %455 = vmatpush1.msra.mxu0 0.0
        %456 = vmatprep.subr.mxu0 0.0
        %457 = vmatpush1.msra.mxu0 0.0
        %458 = vmatprep.subr.mxu0 0.0
        %459 = vmatpush1.msra.mxu0 0.0
        %460 = vmatprep.subr.mxu0 0.0
        %461 = vmatpush1.msra.mxu0 0.0
        %462 = vmatprep.subr.mxu0 0.0
        %463 = vmatpush1.msra.mxu0 0.0
        %464 = vmatprep.subr.mxu0 0.0
        %465 = vmatpush1.msra.mxu0 0.0
        %466 = vmatprep.subr.mxu0 0.0
        %467 = vmatpush1.msra.mxu0 0.0
        %468 = vmatprep.subr.mxu0 0.0
        %469 = vmatpush1.msra.mxu0 0.0
        %470 = vmatprep.subr.mxu0 0.0
        %471 = vmatpush1.msra.mxu0 0.0
        %472 = vmatprep.subr.mxu0 0.0
        %473 = vmatpush1.msra.mxu0 0.0
        %474 = vmatprep.subr.mxu0 0.0
        %475 = vmatpush1.msra.mxu0 0.0
        %476 = vmatprep.subr.mxu0 0.0
        %477 = vmatpush1.msra.mxu0 0.0
        %478 = vmatprep.subr.mxu0 0.0
        %479 = vmatpush1.msra.mxu0 0.0
        %480 = vmatprep.subr.mxu0 0.0
        %481 = vmatpush1.msra.mxu0 0.0
        %482 = vmatprep.subr.mxu0 0.0
        %483 = vmatpush1.msra.mxu0 0.0
        %484 = vmatprep.subr.mxu0 0.0
        %485 = vmatpush1.msra.mxu0 0.0
        %486 = vmatprep.subr.mxu0 0.0
        %487 = vmatpush1.msra.mxu0 0.0
        %488 = vmatprep.subr.mxu0 0.0
        %489 = vmatpush1.msra.mxu0 0.0
        %490 = vmatprep.subr.mxu0 0.0
        %491 = vmatpush1.msra.mxu0 0.0
        %492 = vmatprep.subr.mxu0 0.0
        %493 = vmatpush1.msra.mxu0 0.0
        %494 = vmatprep.subr.mxu0 0.0
        %495 = vmatpush1.msra.mxu0 0.0
        %496 = vmatprep.subr.mxu0 0.0
        %497 = vmatpush1.msra.mxu0 0.0
        %498 = vmatprep.subr.mxu0 0.0
        %499 = vmatpush1.msra.mxu0 0.0
        %500 = vmatprep.subr.mxu0 0.0
        %501 = vmatpush1.msra.mxu0 0.0
        %502 = vmatprep.mubr.f32.mxu0 0.0
        %503 = vmatmul.mubr.f32.gmra.mrb[0].mxu0 %v273
        %v504 = vpop.f32.mrb[0].mxu0
        %v505 = vadd.f32 0.0, %v504
        %v506 = vpop.f32.mrb[0].mxu0
        %507 = vdwg.mxu0
        %508 = vst.msk [vmem:[%s267] sm:$0xff] %vm271, %v505
        %s509 = sand.u32 %s121, 1
        %s510 = scalar_lea.sflag [#allocation3], %s509
        %s511 = sand.u32 %s121, 1
        %s512 = smul.addr %s511, 8
        %s513 = scalar_lea.vmem [#allocation2], %s512
        %s514 = sand.u32 %s147, 1
        %s515 = scalar_lea.sflag [#allocation5], %s514
        %s516 = sand.u32 %s147, 1
        %s517 = smul.addr %s516, 8
        %s518 = scalar_lea.vmem [#allocation4], %s517
        %p519 = scmp.lt.s32.totalorder %s24, 1
        %s520 = scalar_select %p519, %s24, 1
        %s521 = smul.addr %s520, 8
        %s522 = scalar_lea.vmem %s6, %s521
        // Predicated region
        $region37: #{tpu_custom_call.1} parent=35 // pred_check
          %p523 = pneg %p131
        $region38: #{tpu_custom_call.1} parent=35 // pred_check_branch
          %525 = sbr.rel (%p523) target = $region40
        $region39: #{tpu_custom_call.1} parent=35 // pred_region
          %s527 = ssub.s32 128, 128
          %528 = vsyncadd %s510, %s527
          %s529 = smul.addr %s24, 128
          %s530 = scalar_lea.hbm %s4, %s529
          %s532 = sshll.u32 %s513, 4
          %s533 = int_to_ptr.vmem [resolvable:$true] %s532
          %535 = dma.vmem_to_hbm [thread:$0]  %s533, 128, %s530, %s510
        $region40: #{tpu_custom_call.1} parent=35 // pred_fallthru
          _
        // Predicated region
        $region41: #{tpu_custom_call.1} parent=35 // pred_check
          %p536 = pneg %p157
        $region42: #{tpu_custom_call.1} parent=35 // pred_check_branch
          %538 = sbr.rel (%p536) target = $region44
        $region43: #{tpu_custom_call.1} parent=35 // pred_region
          %s540 = ssub.s32 128, 128
          %541 = vsyncadd %s515, %s540
          %s542 = smul.addr %s24, 128
          %s543 = scalar_lea.hbm %s5, %s542
          %s545 = sshll.u32 %s518, 4
          %s546 = int_to_ptr.vmem [resolvable:$true] %s545
          %548 = dma.vmem_to_hbm [thread:$0]  %s546, 128, %s543, %s515
        $region44: #{tpu_custom_call.1} parent=35 // pred_fallthru
          _
        // Predicated region
        $region45: #{tpu_custom_call.1} parent=35 // pred_check
          %p549 = pneg %p183
        $region46: #{tpu_custom_call.1} parent=35 // pred_check_branch
          %551 = sbr.rel (%p549) target = $region48
        $region47: #{tpu_custom_call.1} parent=35 // pred_region
          _
        $region48: #{tpu_custom_call.1} parent=35 // pred_fallthru
          _
      $region36: #{tpu_custom_call.1} parent=5 // pred_fallthru
        _
      %p552 = scmp.le.s32.totalorder 2, %s19
      // Predicated region
      $region49: #{tpu_custom_call.1} parent=5 // pred_check
        %p553 = pneg %p552
      $region50: #{tpu_custom_call.1} parent=5 // pred_check_branch
        %555 = sbr.rel (%p553) target = $region52
      $region51: #{tpu_custom_call.1} parent=5 // pred_region
        %s556 = ssub.s32 %s19, 2
        // Predicated region
        $region53: #{tpu_custom_call.1} parent=51 // pred_check
          %p557 = pneg %p137
        $region54: #{tpu_custom_call.1} parent=51 // pred_check_branch
          %559 = sbr.rel (%p557) target = $region56
        $region55: #{tpu_custom_call.1} parent=51 // pred_region
          %s560 = sand.u32 %s122, 1
          %s561 = scalar_lea.sflag [#allocation3], %s560
          %s562 = sand.u32 %s122, 1
          %s563 = smul.addr %s562, 8
          %s564 = scalar_lea.vmem [#allocation2], %s563
          %565 = dma.done %s561, 128
        $region56: #{tpu_custom_call.1} parent=51 // pred_fallthru
          _
        // Predicated region
        $region57: #{tpu_custom_call.1} parent=51 // pred_check
          %p566 = pneg %p163
        $region58: #{tpu_custom_call.1} parent=51 // pred_check_branch
          %568 = sbr.rel (%p566) target = $region60
        $region59: #{tpu_custom_call.1} parent=51 // pred_region
          %s569 = sand.u32 %s148, 1
          %s570 = scalar_lea.sflag [#allocation5], %s569
          %s571 = sand.u32 %s148, 1
          %s572 = smul.addr %s571, 8
          %s573 = scalar_lea.vmem [#allocation4], %s572
          %574 = dma.done %s570, 128
        $region60: #{tpu_custom_call.1} parent=51 // pred_fallthru
          _
        // Predicated region
        $region61: #{tpu_custom_call.1} parent=51 // pred_check
          %p575 = pneg %p189
        $region62: #{tpu_custom_call.1} parent=51 // pred_check_branch
          %577 = sbr.rel (%p575) target = $region64
        $region63: #{tpu_custom_call.1} parent=51 // pred_region
          %p578 = scmp.lt.s32.totalorder %s25, 1
          %s579 = scalar_select %p578, %s25, 1
          %s580 = smul.addr %s579, 8
          %s581 = scalar_lea.vmem %s6, %s580
        $region64: #{tpu_custom_call.1} parent=51 // pred_fallthru
          _
      $region52: #{tpu_custom_call.1} parent=5 // pred_fallthru
        _
    $region6: #{tpu_custom_call.1} parent=1 // loop_footer
      %s23 = sadd.s32 1, %s19
    $region7: #{tpu_custom_call.1} parent=1 // loop_footer_branch
      %18 = sbr.rel target = $region3
    $region8: #{tpu_custom_call.1} parent=1 // loop_exit
      _
    %582 = vsyncpa [#allocation3], 1
    %s583 = scalar_lea.sflag [#allocation3], 1
    %584 = vsyncpa %s583, 1
    %585 = vsyncpa [#allocation5], 1
    %s586 = scalar_lea.sflag [#allocation5], 1
    %587 = vsyncpa %s586, 1

</llo_original>
